<compile_context>
chip_gen: v7x
topology: tpu7x:2x2x1
jax: 0.10.0
libtpu: 0.0.40
codegen_flags: <defaults>
</compile_context>

<pallas_src>
import functools

import jax
import jax.numpy as jnp
from jax.experimental import pallas as pl
from jax.experimental.pallas import tpu as pltpu


def _mean_pool_masked_kernel(cs_ref, inv_ref, h_ref, o_ref, acc_ref):
    """Grid = (batch tiles, S tiles); the S axis is a sequential reduction.

    cs_ref : VMEM int32[TB, 1, 1]  per-row valid counts (clamped to [1, S])
    inv_ref: VMEM f32  [TB, 1]     per-row 1/count (precomputed in the wrapper)
    h_ref  : VMEM      [TB, TS, D] input tile (native dtype)
    o_ref  : VMEM      [TB, D]     pooled output tile
    acc_ref: VMEM f32  [TB, D]     running sum across the S tiles
    """
    s = pl.program_id(1)
    tb, ts, _ = h_ref.shape

    @pl.when(s == 0)
    def _():
        acc_ref[...] = jnp.zeros_like(acc_ref)

    h = h_ref[...].astype(jnp.float32)                          # (TB, TS, D)
    n = cs_ref[...]                                             # (TB, 1, 1)
    seq = jax.lax.broadcasted_iota(jnp.int32, (tb, ts, 1), 1) + s * ts
    mask = seq < n                                              # (TB, TS, 1)
    acc_ref[...] += jnp.where(mask, h, 0.0).sum(axis=1)         # (TB, D)

    @pl.when(s == pl.num_programs(1) - 1)
    def _():
        o_ref[...] = (acc_ref[...] * inv_ref[...]).astype(o_ref.dtype)


def _mean_pool_plain_kernel(h_ref, o_ref, acc_ref, *, inv_count, s_total):
    """context_sizes=None specialization: plain mean over S, no per-row inputs.

    A static mask is only compiled in when the last S block is partial
    (s_total % TS != 0); otherwise this is a pure sum + scale.
    """
    s = pl.program_id(1)
    tb, ts, _ = h_ref.shape

    @pl.when(s == 0)
    def _():
        acc_ref[...] = jnp.zeros_like(acc_ref)

    h = h_ref[...].astype(jnp.float32)
    if s_total % ts != 0:   # static: mask padded rows of the trailing partial block
        seq = jax.lax.broadcasted_iota(jnp.int32, (tb, ts, 1), 1) + s * ts
        h = jnp.where(seq < s_total, h, 0.0)
    acc_ref[...] += h.sum(axis=1)

    @pl.when(s == pl.num_programs(1) - 1)
    def _():
        o_ref[...] = (acc_ref[...] * inv_count).astype(o_ref.dtype)


def _choose_tiles(B, S, D, itemsize, budget_bytes=4 * 1024 * 1024):
    """Pick (TB, TS) so one input buffer is <= ~budget_bytes and every tile dim
    is either sublane-aligned (8 for f32, 16 for bf16, ...) or the full dim."""
    sub = max(8, 32 // max(itemsize, 1))
    row_bytes = S * D * itemsize
    if B * row_bytes <= budget_bytes:
        return B, S                                   # whole problem, one block
    if sub * row_bytes <= budget_bytes:
        ts = S                                        # whole rows, batch-tiled
        tb = (budget_bytes // row_bytes) // sub * sub
        tb = min(B, tb, 256)
    else:                                             # rows too big: tile S too
        tb = min(B, sub)
        ts = budget_bytes // (tb * D * itemsize)
        ts = min(S, max(sub, (ts // sub) * sub))
    return tb, ts


def mean_pooling(h, context_sizes=None, *, block_b=None, block_s=None):
    """Pallas equivalent of MeanPooling(pooling_dim=-2).forward(h, context_sizes).

    Note: counts are clamped to [1, S].  count > S behaves like torch slicing
    (mean over all S rows); count == 0 returns 0 for that row instead of NaN.
    """
    B, S, D = h.shape
    itemsize = jnp.dtype(h.dtype).itemsize
    tb, ts = _choose_tiles(B, S, D, itemsize)
    if block_b is not None:
        tb = max(1, min(int(block_b), B))
    if block_s is not None:
        ts = max(1, min(int(block_s), S))

    nb = pl.cdiv(B, tb)
    ns = pl.cdiv(S, ts)

    out_shape = jax.ShapeDtypeStruct((B, D), h.dtype)
    h_spec = pl.BlockSpec((tb, ts, D), lambda b, s: (b, s, 0))
    out_spec = pl.BlockSpec((tb, D), lambda b, s: (b, 0))
    scratch = [pltpu.VMEM((tb, D), jnp.float32)]
    cparams = pltpu.CompilerParams(
        dimension_semantics=("parallel", "arbitrary"),
        vmem_limit_bytes=32 * 1024 * 1024,   # ~2x4MiB input bufs + out/acc, all gens
    )

    if context_sizes is None:
        # Specialized plain-mean kernel: no count/inv side inputs, no per-row mask.
        kernel = functools.partial(
            _mean_pool_plain_kernel, inv_count=1.0 / S, s_total=S)
        return pl.pallas_call(
            kernel,
            out_shape=out_shape,
            grid_spec=pltpu.PrefetchScalarGridSpec(
                num_scalar_prefetch=0,
                grid=(nb, ns),
                in_specs=[h_spec],
                out_specs=out_spec,
                scratch_shapes=scratch,
            ),
            compiler_params=cparams,
        )(h)

    cs = jnp.asarray(context_sizes, dtype=jnp.int32)
    cs = jnp.clip(cs, 1, S)
    inv = (1.0 / cs.astype(jnp.float32)).reshape(B, 1)     # exact per-row 1/n
    cs3 = cs.reshape(B, 1, 1)

    cs_spec = pl.BlockSpec((tb, 1, 1), lambda b, s: (b, 0, 0))
    inv_spec = pl.BlockSpec((tb, 1), lambda b, s: (b, 0))

    return pl.pallas_call(
        _mean_pool_masked_kernel,
        out_shape=out_shape,
        grid_spec=pltpu.PrefetchScalarGridSpec(
            num_scalar_prefetch=0,
            grid=(nb, ns),
            in_specs=[cs_spec, inv_spec, h_spec],
            out_specs=out_spec,
            scratch_shapes=scratch,
        ),
        compiler_params=cparams,
    )(cs3, inv, h)


def _reference(h, context_sizes=None):
    """Pure-JAX reference mirroring the PyTorch forward."""
    if context_sizes is None:
        return jnp.mean(h, axis=-2)
    rows = []
    for i in range(h.shape[0]):
        n = min(max(int(context_sizes[i]), 1), h.shape[1])
        rows.append(jnp.mean(h[i, :n], axis=-2))
    return jnp.stack(rows, axis=0)


if __name__ == "__main__":
    key = jax.random.PRNGKey(0)
    k1, k2, k3 = jax.random.split(key, 3)

    # Case 1: module-spec shapes with per-batch context sizes.
    B, S, D = 2, 8, 32
    h = jax.random.normal(k1, (B, S, D), dtype=jnp.float32)
    cs = [5, 8]
    out = jax.block_until_ready(mean_pooling(h, cs))
    assert out.shape == (B, D)
    assert jnp.allclose(out, _reference(h, cs), atol=1e-5, rtol=1e-5)

    # Case 2: context_sizes=None -> specialized plain-mean kernel (single block).
    out = jax.block_until_ready(mean_pooling(h, None))
    assert jnp.allclose(out, _reference(h, None), atol=1e-5, rtol=1e-5)

    # Case 3: multi-tile grid with partial batch/S blocks (masked path).
    B, S, D = 10, 40, 128
    h = jax.random.normal(k2, (B, S, D), dtype=jnp.float32)
    cs = [1, 3, 7, 12, 16, 23, 31, 39, 40, 40]
    out = jax.block_until_ready(mean_pooling(h, cs, block_b=8, block_s=16))
    assert jnp.allclose(out, _reference(h, cs), atol=1e-5, rtol=1e-5)

    # Case 4: None path with a partial trailing S block (static-mask plain kernel).
    out = jax.block_until_ready(mean_pooling(h, None, block_b=8, block_s=16))
    assert jnp.allclose(out, _reference(h, None), atol=1e-5, rtol=1e-5)

    # Case 5: None path, multi-step S reduction with exact S tiling (no mask compiled).
    B, S, D = 16, 32, 128
    h = jax.random.normal(k3, (B, S, D), dtype=jnp.float32)
    out = jax.block_until_ready(mean_pooling(h, None, block_b=8, block_s=16))
    assert jnp.allclose(out, _reference(h, None), atol=1e-5, rtol=1e-5)

    # Case 6: bf16 stays bf16 on the wire, f32 accumulation in-kernel.
    h_bf16 = h.astype(jnp.bfloat16)
    cs = list(range(1, 17))
    out = jax.block_until_ready(mean_pooling(h_bf16, cs, block_b=16, block_s=16))
    assert out.dtype == jnp.bfloat16
    ref = _reference(h_bf16.astype(jnp.float32), cs)
    assert jnp.allclose(out.astype(jnp.float32), ref, atol=2e-2, rtol=2e-2)

    print("KERNEL_OK")
</pallas_src>

<mosaic_0001>
module attributes {stable_mosaic.version = 11 : i64} {
  func.func @_mean_pool_masked_kernel(%arg0: i32, %arg1: i32, %arg2: memref<2x1x1xi32, #tpu.memory_space<vmem>>, %arg3: memref<2x1xf32, #tpu.memory_space<vmem>>, %arg4: memref<2x8x32xf32, #tpu.memory_space<vmem>>, %arg5: memref<2x32xf32, #tpu.memory_space<vmem>>, %arg6: memref<2x32xf32, #tpu.memory_space<vmem>>) attributes {dimension_semantics = [#tpu.dimension_semantics<parallel>, #tpu.dimension_semantics<arbitrary>], iteration_bounds = array<i64: 1, 1>, scalar_prefetch = 0 : i64, scratch_operands = 1 : i64, tpu.core_type = #tpu.core_type<tc>, window_params = [{transform_indices = @transform_0, window_bounds = array<i64: 2, 1, 1>}, {transform_indices = @transform_1, window_bounds = array<i64: 2, 1>}, {transform_indices = @transform_2, window_bounds = array<i64: 2, 8, 32>}, {transform_indices = @transform_3, window_bounds = array<i64: 2, 32>}]} {
    %c0_i32 = arith.constant 0 : i32
    %0 = arith.cmpi eq, %arg1, %c0_i32 : i32
    %1 = arith.extui %0 : i1 to i32
    %c0_i32_0 = arith.constant 0 : i32
    %2 = arith.cmpi ne, %1, %c0_i32_0 : i32
    scf.if %2 {
      %cst_13 = arith.constant 0.000000e+00 : f32
      %22 = vector.broadcast %cst_13 : f32 to vector<2x32xf32>
      %c0_14 = arith.constant 0 : index
      %c0_15 = arith.constant 0 : index
      %23 = vector.load %arg6[%c0_14, %c0_15] : memref<2x32xf32, #tpu.memory_space<vmem>>, vector<2x32xf32>
      tpu.vector_store %arg6[%c0_14, %c0_15], %22 {strides = array<i32>} : memref<2x32xf32, #tpu.memory_space<vmem>>, vector<2x32xf32>,
    } else {
    }
    %c0 = arith.constant 0 : index
    %c0_1 = arith.constant 0 : index
    %c0_2 = arith.constant 0 : index
    %3 = vector.load %arg4[%c0, %c0_1, %c0_2] : memref<2x8x32xf32, #tpu.memory_space<vmem>>, vector<2x8x32xf32>
    %c0_3 = arith.constant 0 : index
    %c0_4 = arith.constant 0 : index
    %c0_5 = arith.constant 0 : index
    %4 = vector.load %arg2[%c0_3, %c0_4, %c0_5] : memref<2x1x1xi32, #tpu.memory_space<vmem>>, vector<2x1x1xi32>
    %5 = tpu.iota {dimensions = array<i32: 1>} : vector<2x8x1xi32>
    %c8_i32 = arith.constant 8 : i32
    %6 = arith.muli %arg1, %c8_i32 : i32
    %7 = vector.broadcast %6 : i32 to vector<2x8x1xi32>
    %8 = arith.addi %5, %7 : vector<2x8x1xi32>
    %9 = vector.broadcast %4 : vector<2x1x1xi32> to vector<2x8x1xi32>
    %10 = arith.cmpi slt, %8, %9 : vector<2x8x1xi32>
    %c0_6 = arith.constant 0 : index
    %c0_7 = arith.constant 0 : index
    %11 = vector.load %arg6[%c0_6, %c0_7] : memref<2x32xf32, #tpu.memory_space<vmem>>, vector<2x32xf32>
    %cst = arith.constant 0.000000e+00 : f32
    %12 = vector.shape_cast %10 : vector<2x8x1xi1> to vector<2x8x1xi1>
    %13 = vector.broadcast %12 : vector<2x8x1xi1> to vector<2x8x32xi1>
    %14 = vector.broadcast %cst : f32 to vector<2x8x32xf32>
    %15 = arith.select %13, %3, %14 : vector<2x8x32xi1>, vector<2x8x32xf32>
    %cst_8 = arith.constant dense<0.000000e+00> : vector<2x32xf32>
    %16 = vector.multi_reduction <add>, %15, %cst_8 [1] : vector<2x8x32xf32> to vector<2x32xf32>
    %17 = arith.addf %11, %16 : vector<2x32xf32>
    %c0_9 = arith.constant 0 : index
    %c0_10 = arith.constant 0 : index
    %18 = vector.load %arg6[%c0_9, %c0_10] : memref<2x32xf32, #tpu.memory_space<vmem>>, vector<2x32xf32>
    tpu.vector_store %arg6[%c0_9, %c0_10], %17 {strides = array<i32>} : memref<2x32xf32, #tpu.memory_space<vmem>>, vector<2x32xf32>,
    %c0_i32_11 = arith.constant 0 : i32
    %19 = arith.cmpi eq, %arg1, %c0_i32_11 : i32
    %20 = arith.extui %19 : i1 to i32
    %c0_i32_12 = arith.constant 0 : i32
    %21 = arith.cmpi ne, %20, %c0_i32_12 : i32
    scf.if %21 {
      %c0_13 = arith.constant 0 : index
      %c0_14 = arith.constant 0 : index
      %22 = vector.load %arg6[%c0_13, %c0_14] : memref<2x32xf32, #tpu.memory_space<vmem>>, vector<2x32xf32>
      %c0_15 = arith.constant 0 : index
      %c0_16 = arith.constant 0 : index
      %23 = vector.load %arg3[%c0_15, %c0_16] : memref<2x1xf32, #tpu.memory_space<vmem>>, vector<2x1xf32>
      %24 = vector.broadcast %23 : vector<2x1xf32> to vector<2x32xf32>
      %25 = arith.mulf %22, %24 : vector<2x32xf32>
      %c0_17 = arith.constant 0 : index
      %c0_18 = arith.constant 0 : index
      %26 = vector.load %arg5[%c0_17, %c0_18] : memref<2x32xf32, #tpu.memory_space<vmem>>, vector<2x32xf32>
      tpu.vector_store %arg5[%c0_17, %c0_18], %25 {strides = array<i32>} : memref<2x32xf32, #tpu.memory_space<vmem>>, vector<2x32xf32>,
    } else {
    }
    return
  }
  func.func @transform_0(%arg0: i32, %arg1: i32) -> (i32, i32, i32) {
    %c0_i32 = arith.constant 0 : i32
    %c0_i32_0 = arith.constant 0 : i32
    %c0_i32_1 = arith.constant 0 : i32
    return %arg0, %c0_i32, %c0_i32_0 : i32, i32, i32
  }
  func.func @transform_1(%arg0: i32, %arg1: i32) -> (i32, i32) {
    %c0_i32 = arith.constant 0 : i32
    %c0_i32_0 = arith.constant 0 : i32
    return %arg0, %c0_i32 : i32, i32
  }
  func.func @transform_2(%arg0: i32, %arg1: i32) -> (i32, i32, i32) {
    %c0_i32 = arith.constant 0 : i32
    %c0_i32_0 = arith.constant 0 : i32
    return %arg0, %arg1, %c0_i32 : i32, i32, i32
  }
  func.func @transform_3(%arg0: i32, %arg1: i32) -> (i32, i32) {
    %c0_i32 = arith.constant 0 : i32
    %c0_i32_0 = arith.constant 0 : i32
    return %arg0, %c0_i32 : i32, i32
  }
}

</mosaic_0001>

<llo_original>
// kernel: tpu_custom_call.1
$region0: #{tpu_custom_call.1}
  #allocation0 [shape = 'u32[]', space=smem, size = 0x4, offset = 0x4, fixed_abs, tag = 'smem constant byte address 0x4 - core index']
  #allocation1 [shape = 'u32[144,128]{1,0:T(1,128)}', space=vmem, size = 0x12000, scoped, tag = 'internal scratch']
  #allocation2 [shape = 'f32[2,32]{1,0:T(2,128)}', space=vmem, size = 0x400, scoped, tag = 'scratch operand']
  %s0 = inlined_call_operand.vmem [shape: s32[2,1,1], index: 0, kind: input, shape index: {}]
  %s1 = inlined_call_operand.vmem [shape: f32[2,1], index: 1, kind: input, shape index: {}]
  %s2 = inlined_call_operand.hbm [shape: f32[2,8,32], index: 2, kind: input, shape index: {}]
  %s3 = inlined_call_operand.hbm [shape: f32[2,32], index: 3, kind: output, shape index: {}]
  %s4 = sld [smem:[#allocation0]]
  $region34: #{tpu_custom_call.1} parent=0
    _
  %s6 = ssub.s32 1, %s4
  %s7 = scalar_select 0, %s6, %s4
  $region1: #{tpu_custom_call.1} parent=0
    #allocation3 [shape = 'u8[8192]{0}', space=vmem, size = 0x2000, scoped, tag = 'input window, operand 2, single buffered']
    #allocation4 [shape = 's32[1]{0}', space=sflag, size = 0x4, scoped, tag = 'scoped memory for tpu_custom_call.1']
    #allocation5 [shape = 's32[1]{0}', space=sflag, size = 0x4, scoped, tag = 'scoped memory for tpu_custom_call.1']
    #allocation6 [shape = 'u8[1024]{0}', space=vmem, size = 0x400, scoped, tag = 'output window, operand 0, single buffered']
    %8 = vsyncpa [#allocation4], 0
    %9 = vsyncpa [#allocation5], 0
    // Predicated region
    $region2: #{tpu_custom_call.1} parent=1 // pred_check
      _
    $region3: #{tpu_custom_call.1} parent=1 // pred_check_branch
      %11 = sbr.rel (0) target = $region5
    $region4: #{tpu_custom_call.1} parent=1 // pred_region
      _
    $region5: #{tpu_custom_call.1} parent=1 // pred_fallthru
      _
    // Predicated region
    $region6: #{tpu_custom_call.1} parent=1 // pred_check
      _
    $region7: #{tpu_custom_call.1} parent=1 // pred_check_branch
      %13 = sbr.rel (0) target = $region9
    $region8: #{tpu_custom_call.1} parent=1 // pred_region
      _
    $region9: #{tpu_custom_call.1} parent=1 // pred_fallthru
      _
    // Predicated region
    $region10: #{tpu_custom_call.1} parent=1 // pred_check
      _
    $region11: #{tpu_custom_call.1} parent=1 // pred_check_branch
      %15 = sbr.rel (0) target = $region13
    $region12: #{tpu_custom_call.1} parent=1 // pred_region
      %s17 = ssub.s32 256, 256
      %18 = vsyncadd [#allocation4], %s17
      %s19 = sshll.u32 [#allocation3], 4
      %s20 = int_to_ptr.vmem [resolvable:$true] %s19
      %25 = dma.hbm_to_vmem [thread:$0]  %s2, 256, %s20, [#allocation4], 128, 128, 8
    $region13: #{tpu_custom_call.1} parent=1 // pred_fallthru
      _
    // Predicated region
    $region14: #{tpu_custom_call.1} parent=1 // pred_check
      _
    $region15: #{tpu_custom_call.1} parent=1 // pred_check_branch
      %27 = sbr.rel (0) target = $region17
    $region16: #{tpu_custom_call.1} parent=1 // pred_region
      %28 = dma.done [#allocation4], 256
    $region17: #{tpu_custom_call.1} parent=1 // pred_fallthru
      _
    %p29 = scmp.eq.s32.totalorder 0, 0
    // Predicated region
    $region18: #{tpu_custom_call.1} parent=1 // pred_check
      %p30 = pneg %p29
    $region19: #{tpu_custom_call.1} parent=1 // pred_check_branch
      %32 = sbr.rel (%p30) target = $region21
    $region20: #{tpu_custom_call.1} parent=1 // pred_region
      %vm33 = vcmask 254976
      %34 = vst.msk [vmem:[#allocation2] sm:$0x3] %vm33, 0.0
    $region21: #{tpu_custom_call.1} parent=1 // pred_fallthru
      _
    %v35 = vld [vmem:[#allocation3] sm:$0xff]
    %v36 = vld [vmem:[#allocation3 + $0x8] sm:$0xff]
    %v37 = vld [vmem:[%s0] sm:$0x1]
    %v38 = vld [vmem:[%s0 + $0x1] sm:$0x1]
    %v39 = vlaneseq
    %v40 = vshrl.u32 %v39, 7
    %s41 = smul.u32 0, 8
    %v42 = vstv %s41
    %v43 = vadd.s32 %v40, %v42
    %v44 = vlaneseq
    %v45 = vshrl.u32 %v44, 7
    %v46 = vsub.s32 0, %v45
    %v47 = vrot.slane %v37, %v46
    %v48 = vlaneseq
    %v49 = vshrl.u32 %v48, 7
    %v50 = vsub.s32 0, %v49
    %v51 = vrot.slane %v38, %v50
    %vm52 = vcmp.lt.s32.totalorder %v43, %v47
    %vm53 = vcmp.lt.s32.totalorder %v43, %v51
    %v54 = vld [vmem:[#allocation2] sm:$0x3]
    %v55 = vsel %vm52, 1, 0
    %v56 = vsel %vm53, 1, 0
    %57 = vset.pattern.permute.xlu0 0
    %58 = vperm.xlu0 %57, %v55
    %v59 = vpop.permute.xlu0 %58
    %60 = vset.pattern.permute.xlu0 0
    %61 = vperm.xlu0 %60, %v56
    %v62 = vpop.permute.xlu0 %61
    %vm63 = vcmp.eq.s32.totalorder %v59, 1
    %vm64 = vcmp.eq.s32.totalorder %v62, 1
    %v65 = vsel %vm63, %v35, 0.0
    %v66 = vsel %vm64, %v36, 0.0
    %vm67 = vcmask 261120
    %v68 = vsel %vm67, %v65, 0.0
    %v69 = vrot.slane %v68, 4
    %v70 = vadd.f32 %v68, %v69
    %v71 = vrot.slane %v70, 2
    %v72 = vadd.f32 %v70, %v71
    %v73 = vrot.slane %v72, 1
    %v74 = vadd.f32 %v72, %v73
    %v75 = vsel %vm67, %v66, 0.0
    %v76 = vrot.slane %v75, 4
    %v77 = vadd.f32 %v75, %v76
    %v78 = vrot.slane %v77, 2
    %v79 = vadd.f32 %v77, %v78
    %v80 = vrot.slane %v79, 1
    %v81 = vadd.f32 %v79, %v80
    %vm84 = vcmask 1041409
    %v85 = vsel %vm84, %v81, %v74
    %v87 = vadd.f32 %v54, %v85
    %vm88 = vcmask 254976
    %89 = vst.msk [vmem:[#allocation2] sm:$0x3] %vm88, %v87
    // Predicated region
    $region22: #{tpu_custom_call.1} parent=1 // pred_check
      %p90 = pneg %p29
    $region23: #{tpu_custom_call.1} parent=1 // pred_check_branch
      %92 = sbr.rel (%p90) target = $region25
    $region24: #{tpu_custom_call.1} parent=1 // pred_region
      %v93 = vld [vmem:[#allocation2] sm:$0x3]
      %v94 = vld [vmem:[%s1] sm:$0x3]
      %96 = vset.pattern.permute.xlu0 0
      %97 = vperm.xlu0 %96, %v94
      %v98 = vpop.permute.xlu0 %97
      %v100 = vmul.f32 %v93, %v98
      %101 = vst.msk [vmem:[#allocation6] sm:$0x3] %vm88, %v100
    $region25: #{tpu_custom_call.1} parent=1 // pred_fallthru
      _
    // Predicated region
    $region26: #{tpu_custom_call.1} parent=1 // pred_check
      _
    $region27: #{tpu_custom_call.1} parent=1 // pred_check_branch
      %103 = sbr.rel (0) target = $region29
    $region28: #{tpu_custom_call.1} parent=1 // pred_region
      %s105 = ssub.s32 32, 32
      %106 = vsyncadd [#allocation5], %s105
      %s108 = sshll.u32 [#allocation6], 4
      %s109 = int_to_ptr.vmem [resolvable:$true] %s108
      %111 = dma.vmem_to_hbm [thread:$0]  %s109, 32, %s3, [#allocation5]
    $region29: #{tpu_custom_call.1} parent=1 // pred_fallthru
      _
    // Predicated region
    $region30: #{tpu_custom_call.1} parent=1 // pred_check
      _
    $region31: #{tpu_custom_call.1} parent=1 // pred_check_branch
      %113 = sbr.rel (0) target = $region33
    $region32: #{tpu_custom_call.1} parent=1 // pred_region
      %114 = dma.done [#allocation5], 32
    $region33: #{tpu_custom_call.1} parent=1 // pred_fallthru
      _
    %115 = vsyncpa [#allocation4], 1
    %116 = vsyncpa [#allocation5], 1

</llo_original>
